<compile_context>
chip_gen: v7x
topology: tpu7x:2x2x1
jax: 0.10.0
libtpu: 0.0.40
codegen_flags: <defaults>
</compile_context>

<pallas_src>
import math
from functools import partial

import jax
import jax.numpy as jnp
from jax.experimental import pallas as pl
from jax.experimental.pallas import tpu as pltpu


def _segments(ls):
    """Return [(offset, 2l+1), ...] and total irreps dim for a list of l values."""
    segs, off = [], 0
    for l in ls:
        d = 2 * l + 1
        segs.append((off, d))
        off += d
    return segs, off


def _cdiv(a, b):
    return -(-a // b)


# ---------------------------------------------------------------------------
# Pallas kernels (batch on the lane axis)
# ---------------------------------------------------------------------------

def _uv_kernel(x1_ref, x2_ref, o_ref, *, segments, scaled):
    # x1_ref: (D, C1, TB), x2_ref: (D, C2, TB), o_ref: (L, C1, C2, TB)
    x1 = x1_ref[...].astype(jnp.float32)
    x2 = x2_ref[...].astype(jnp.float32)
    for i, (start, dim) in enumerate(segments):
        # Outer product over channels, accumulated over the (major-axis) irrep
        # components with fully unrolled VPU multiply-adds.  All operands are
        # lane-dense (last dim = TB); slicing the leading axis is free.
        acc = x1[start][:, None, :] * x2[start][None, :, :]          # (C1, C2, TB)
        for d in range(1, dim):
            acc = acc + x1[start + d][:, None, :] * x2[start + d][None, :, :]
        if scaled:
            acc = acc * (1.0 / math.sqrt(dim))
        o_ref[i] = acc.astype(o_ref.dtype)                            # lane-dense store


def _uu_kernel(x1_ref, x2_ref, o_ref, *, segments, scaled):
    # x1_ref/x2_ref: (D, C, TB), o_ref: (L, C, TB)
    x1 = x1_ref[...].astype(jnp.float32)
    x2 = x2_ref[...].astype(jnp.float32)
    for i, (start, dim) in enumerate(segments):
        acc = x1[start] * x2[start]                                   # (C, TB)
        for d in range(1, dim):
            acc = acc + x1[start + d] * x2[start + d]
        if scaled:
            acc = acc * (1.0 / math.sqrt(dim))
        o_ref[i] = acc.astype(o_ref.dtype)


# ---------------------------------------------------------------------------
# Generation-aware sizing
# ---------------------------------------------------------------------------

def _device_vmem_params():
    kind = ""
    try:
        kind = jax.devices()[0].device_kind.lower()
    except Exception:
        pass
    if ("v5 lite" in kind) or ("v5e" in kind) or ("v5lite" in kind):
        # v5e: ~0.8 TB/s HBM, single vst slot, small default scoped VMEM -> modest tiles.
        return {"budget": 8 << 20, "vmem_limit": 48 << 20}
    if "v6" in kind:
        # v6e: 128 MiB VMEM -> large tiles, raised scoped limit.
        return {"budget": 24 << 20, "vmem_limit": 96 << 20}
    if "v7" in kind:
        # v7x: only 64 MiB physical VMEM, 2 TensorCores -> smaller tiles, keep grid >= 2.
        return {"budget": 12 << 20, "vmem_limit": 48 << 20}
    # Unknown / other generations: conservative.
    return {"budget": 12 << 20, "vmem_limit": 48 << 20}


# ---------------------------------------------------------------------------
# Wrapper (the "module")
# ---------------------------------------------------------------------------

def tensor_dot(input1, input2, ls, feature_mode, scaled=False, block_rows=None):
    segments, D = _segments(ls)
    L = len(ls)
    assert input1.shape[-2] == D, f'Input1 spherical dim mismatch: expected {D}, got {input1.shape[-2]}'
    assert input2.shape[-2] == D, f'Input2 spherical dim mismatch: expected {D}, got {input2.shape[-2]}'
    batch_shape = input1.shape[:-2]
    assert input2.shape[:-2] == batch_shape
    B = int(math.prod(batch_shape)) if batch_shape else 1
    C1, C2 = input1.shape[-1], input2.shape[-1]
    out_dtype = input1.dtype

    if feature_mode == 'uu':
        assert C1 == C2, f"Input channel dims must match in 'uu' mode. Got {C1} and {C2}"
        out_ch = C1
    elif feature_mode == 'uv':
        out_ch = C1 * C2
    else:
        raise ValueError(f'Invalid feature_mode: {feature_mode}')

    # --- layout plumbing (done by XLA outside the kernel): (..., D, C) -> (D, C, B)
    x1t = jnp.moveaxis(input1.reshape(B, D, C1), 0, -1)   # (D, C1, B)
    x2t = jnp.moveaxis(input2.reshape(B, D, C2), 0, -1)   # (D, C2, B)

    gen = _device_vmem_params()

    # --- pick the batch tile TB (lane dim of every block) ----------------------
    if block_rows is not None:
        tb = int(block_rows)
        tb = B if tb >= B else max(128, (tb // 128) * 128)
    else:
        in_itemsize = jnp.dtype(input1.dtype).itemsize
        out_itemsize = jnp.dtype(out_dtype).itemsize
        in_row = D * (C1 + C2) * in_itemsize          # double-buffered inputs
        out_row = L * out_ch * out_itemsize           # double-buffered output
        f32_row = (D * (C1 + C2) + out_ch) * 4        # in-kernel f32 working values
        per_row = 2 * in_row + 2 * out_row + f32_row
        tb = max(128, min(2048, (gen["budget"] // max(per_row, 1)) // 128 * 128))
        # v7x has 2 TensorCores: prefer >= 2 "parallel" grid steps for large batches.
        if 1024 <= B <= tb:
            tb = ((_cdiv(B, 2) + 127) // 128) * 128

    if tb >= B:
        tb, bpad = B, B
    else:
        bpad = _cdiv(B, tb) * tb

    if bpad != B:
        x1t = jnp.pad(x1t, ((0, 0), (0, 0), (0, bpad - B)))
        x2t = jnp.pad(x2t, ((0, 0), (0, 0), (0, bpad - B)))

    grid = (bpad // tb,)
    cparams = pltpu.CompilerParams(
        dimension_semantics=("parallel",),
        vmem_limit_bytes=int(gen["vmem_limit"]),
    )

    if feature_mode == 'uv':
        out_t = pl.pallas_call(
            partial(_uv_kernel, segments=segments, scaled=scaled),
            out_shape=jax.ShapeDtypeStruct((L, C1, C2, bpad), out_dtype),
            grid=grid,
            in_specs=[
                pl.BlockSpec((D, C1, tb), lambda t: (0, 0, t)),
                pl.BlockSpec((D, C2, tb), lambda t: (0, 0, t)),
            ],
            out_specs=pl.BlockSpec((L, C1, C2, tb), lambda t: (0, 0, 0, t)),
            compiler_params=cparams,
        )(x1t, x2t)
        out = jnp.moveaxis(out_t, -1, 0)[:B]                # (B, L, C1, C2)
        return out.reshape(*batch_shape, L, C1, C2)

    else:  # 'uu'
        out_t = pl.pallas_call(
            partial(_uu_kernel, segments=segments, scaled=scaled),
            out_shape=jax.ShapeDtypeStruct((L, C1, bpad), out_dtype),
            grid=grid,
            in_specs=[
                pl.BlockSpec((D, C1, tb), lambda t: (0, 0, t)),
                pl.BlockSpec((D, C1, tb), lambda t: (0, 0, t)),
            ],
            out_specs=pl.BlockSpec((L, C1, tb), lambda t: (0, 0, t)),
            compiler_params=cparams,
        )(x1t, x2t)
        out = jnp.moveaxis(out_t, -1, 0)[:B]                # (B, L, C)
        return out.reshape(*batch_shape, L, C1)


# ---------------------------------------------------------------------------
# Pure-JAX references
# ---------------------------------------------------------------------------

def ref_uv(x1, x2, ls, scaled):
    segments, _ = _segments(ls)
    outs = []
    for (start, dim) in segments:
        o = jnp.einsum('...du,...dv->...uv',
                       x1[..., start:start + dim, :], x2[..., start:start + dim, :])
        if scaled:
            o = o / math.sqrt(dim)
        outs.append(o)
    return jnp.stack(outs, axis=-3)


def ref_uu(x1, x2, ls, scaled):
    segments, _ = _segments(ls)
    outs = []
    for (start, dim) in segments:
        o = jnp.sum(x1[..., start:start + dim, :] * x2[..., start:start + dim, :], axis=-2)
        if scaled:
            o = o / math.sqrt(dim)
        outs.append(o)
    return jnp.stack(outs, axis=-2)


if __name__ == "__main__":
    # irreps = "0e + 1o + 2e"  ->  per-irrep dims (1, 3, 5), irreps.dim = 9, len(irreps) = 3
    ls = [0, 1, 2]
    _, D = _segments(ls)
    L = len(ls)

    key = jax.random.PRNGKey(0)
    k1, k2, k3, k4, k5 = jax.random.split(key, 5)

    # --- small demo shapes -------------------------------------------------
    B, C1, C2 = 2, 8, 4
    x1 = jax.random.normal(k1, (B, D, C1), dtype=jnp.float32)
    x2 = jax.random.normal(k2, (B, D, C2), dtype=jnp.float32)
    x2_same = jax.random.normal(k3, (B, D, C1), dtype=jnp.float32)

    out_uv = tensor_dot(x1, x2, ls, feature_mode='uv', scaled=True)
    jax.block_until_ready(out_uv)
    assert out_uv.shape == (B, L, C1, C2)
    assert jnp.allclose(out_uv, ref_uv(x1, x2, ls, scaled=True), atol=1e-5, rtol=1e-5)

    out_uu = tensor_dot(x1, x2_same, ls, feature_mode='uu', scaled=False)
    jax.block_until_ready(out_uu)
    assert out_uu.shape == (B, L, C1)
    assert jnp.allclose(out_uu, ref_uu(x1, x2_same, ls, scaled=False), atol=1e-5, rtol=1e-5)

    # --- larger multi-dim batch: exercises batch tiling, padding and a
    # --- multi-step "parallel" grid (block_rows forced to 512 -> grid=(3,)) -
    y1 = jax.random.normal(k4, (10, 128, D, C1), dtype=jnp.float32)
    y2 = jax.random.normal(k5, (10, 128, D, C2), dtype=jnp.float32)

    out_big_uv = tensor_dot(y1, y2, ls, feature_mode='uv', scaled=False, block_rows=512)
    jax.block_until_ready(out_big_uv)
    assert out_big_uv.shape == (10, 128, L, C1, C2)
    assert jnp.allclose(out_big_uv, ref_uv(y1, y2, ls, scaled=False), atol=1e-5, rtol=1e-5)

    out_big_uu = tensor_dot(y1, y1, ls, feature_mode='uu', scaled=True, block_rows=512)
    jax.block_until_ready(out_big_uu)
    assert out_big_uu.shape == (10, 128, L, C1)
    assert jnp.allclose(out_big_uu, ref_uu(y1, y1, ls, scaled=True), atol=1e-5, rtol=1e-5)

    print("KERNEL_OK")
</pallas_src>

<mosaic_0001>
module attributes {stable_mosaic.version = 11 : i64} {
  func.func @_uv_kernel(%arg0: i32, %arg1: memref<9x8x2xf32, #tpu.memory_space<vmem>>, %arg2: memref<9x4x2xf32, #tpu.memory_space<vmem>>, %arg3: memref<3x8x4x2xf32, #tpu.memory_space<vmem>>) attributes {dimension_semantics = [#tpu.dimension_semantics<parallel>], iteration_bounds = array<i64: 1>, scalar_prefetch = 0 : i64, scratch_operands = 0 : i64, tpu.core_type = #tpu.core_type<tc>, window_params = [{transform_indices = @transform_0, window_bounds = array<i64: 9, 8, 2>}, {transform_indices = @transform_1, window_bounds = array<i64: 9, 4, 2>}, {transform_indices = @transform_2, window_bounds = array<i64: 3, 8, 4, 2>}]} {
    %c0 = arith.constant 0 : index
    %c0_0 = arith.constant 0 : index
    %c0_1 = arith.constant 0 : index
    %0 = vector.load %arg1[%c0, %c0_0, %c0_1] : memref<9x8x2xf32, #tpu.memory_space<vmem>>, vector<9x8x2xf32>
    %c0_2 = arith.constant 0 : index
    %c0_3 = arith.constant 0 : index
    %c0_4 = arith.constant 0 : index
    %1 = vector.load %arg2[%c0_2, %c0_3, %c0_4] : memref<9x4x2xf32, #tpu.memory_space<vmem>>, vector<9x4x2xf32>
    %2 = vector.extract_strided_slice %0 {offsets = [0, 0, 0], sizes = [1, 8, 2], strides = [1, 1, 1]} : vector<9x8x2xf32> to vector<1x8x2xf32>
    %3 = vector.shape_cast %2 : vector<1x8x2xf32> to vector<8x2xf32>
    %4 = vector.shape_cast %3 : vector<8x2xf32> to vector<8x1x2xf32>
    %5 = vector.extract_strided_slice %1 {offsets = [0, 0, 0], sizes = [1, 4, 2], strides = [1, 1, 1]} : vector<9x4x2xf32> to vector<1x4x2xf32>
    %6 = vector.shape_cast %5 : vector<1x4x2xf32> to vector<4x2xf32>
    %7 = vector.shape_cast %6 : vector<4x2xf32> to vector<1x4x2xf32>
    %8 = vector.broadcast %4 : vector<8x1x2xf32> to vector<8x4x2xf32>
    %9 = vector.broadcast %7 : vector<1x4x2xf32> to vector<8x4x2xf32>
    %10 = arith.mulf %8, %9 : vector<8x4x2xf32>
    %cst = arith.constant 1.000000e+00 : f32
    %11 = vector.broadcast %cst : f32 to vector<8x4x2xf32>
    %12 = arith.mulf %10, %11 : vector<8x4x2xf32>
    %c0_5 = arith.constant 0 : index
    %c0_6 = arith.constant 0 : index
    %c0_7 = arith.constant 0 : index
    %c0_8 = arith.constant 0 : index
    %13 = vector.load %arg3[%c0_5, %c0_6, %c0_7, %c0_8] : memref<3x8x4x2xf32, #tpu.memory_space<vmem>>, vector<1x8x4x2xf32>
    %14 = vector.shape_cast %13 : vector<1x8x4x2xf32> to vector<8x4x2xf32>
    %15 = vector.shape_cast %12 : vector<8x4x2xf32> to vector<1x8x4x2xf32>
    tpu.vector_store %arg3[%c0_5, %c0_6, %c0_7, %c0_8], %15 {strides = array<i32>} : memref<3x8x4x2xf32, #tpu.memory_space<vmem>>, vector<1x8x4x2xf32>,
    %16 = vector.extract_strided_slice %0 {offsets = [1, 0, 0], sizes = [1, 8, 2], strides = [1, 1, 1]} : vector<9x8x2xf32> to vector<1x8x2xf32>
    %17 = vector.shape_cast %16 : vector<1x8x2xf32> to vector<8x2xf32>
    %18 = vector.shape_cast %17 : vector<8x2xf32> to vector<8x1x2xf32>
    %19 = vector.extract_strided_slice %1 {offsets = [1, 0, 0], sizes = [1, 4, 2], strides = [1, 1, 1]} : vector<9x4x2xf32> to vector<1x4x2xf32>
    %20 = vector.shape_cast %19 : vector<1x4x2xf32> to vector<4x2xf32>
    %21 = vector.shape_cast %20 : vector<4x2xf32> to vector<1x4x2xf32>
    %22 = vector.broadcast %18 : vector<8x1x2xf32> to vector<8x4x2xf32>
    %23 = vector.broadcast %21 : vector<1x4x2xf32> to vector<8x4x2xf32>
    %24 = arith.mulf %22, %23 : vector<8x4x2xf32>
    %25 = vector.extract_strided_slice %0 {offsets = [2, 0, 0], sizes = [1, 8, 2], strides = [1, 1, 1]} : vector<9x8x2xf32> to vector<1x8x2xf32>
    %26 = vector.shape_cast %25 : vector<1x8x2xf32> to vector<8x2xf32>
    %27 = vector.shape_cast %26 : vector<8x2xf32> to vector<8x1x2xf32>
    %28 = vector.extract_strided_slice %1 {offsets = [2, 0, 0], sizes = [1, 4, 2], strides = [1, 1, 1]} : vector<9x4x2xf32> to vector<1x4x2xf32>
    %29 = vector.shape_cast %28 : vector<1x4x2xf32> to vector<4x2xf32>
    %30 = vector.shape_cast %29 : vector<4x2xf32> to vector<1x4x2xf32>
    %31 = vector.broadcast %27 : vector<8x1x2xf32> to vector<8x4x2xf32>
    %32 = vector.broadcast %30 : vector<1x4x2xf32> to vector<8x4x2xf32>
    %33 = arith.mulf %31, %32 : vector<8x4x2xf32>
    %34 = arith.addf %24, %33 : vector<8x4x2xf32>
    %35 = vector.extract_strided_slice %0 {offsets = [3, 0, 0], sizes = [1, 8, 2], strides = [1, 1, 1]} : vector<9x8x2xf32> to vector<1x8x2xf32>
    %36 = vector.shape_cast %35 : vector<1x8x2xf32> to vector<8x2xf32>
    %37 = vector.shape_cast %36 : vector<8x2xf32> to vector<8x1x2xf32>
    %38 = vector.extract_strided_slice %1 {offsets = [3, 0, 0], sizes = [1, 4, 2], strides = [1, 1, 1]} : vector<9x4x2xf32> to vector<1x4x2xf32>
    %39 = vector.shape_cast %38 : vector<1x4x2xf32> to vector<4x2xf32>
    %40 = vector.shape_cast %39 : vector<4x2xf32> to vector<1x4x2xf32>
    %41 = vector.broadcast %37 : vector<8x1x2xf32> to vector<8x4x2xf32>
    %42 = vector.broadcast %40 : vector<1x4x2xf32> to vector<8x4x2xf32>
    %43 = arith.mulf %41, %42 : vector<8x4x2xf32>
    %44 = arith.addf %34, %43 : vector<8x4x2xf32>
    %cst_9 = arith.constant 0.577350259 : f32
    %45 = vector.broadcast %cst_9 : f32 to vector<8x4x2xf32>
    %46 = arith.mulf %44, %45 : vector<8x4x2xf32>
    %c1 = arith.constant 1 : index
    %c0_10 = arith.constant 0 : index
    %c0_11 = arith.constant 0 : index
    %c0_12 = arith.constant 0 : index
    %47 = vector.load %arg3[%c1, %c0_10, %c0_11, %c0_12] : memref<3x8x4x2xf32, #tpu.memory_space<vmem>>, vector<1x8x4x2xf32>
    %48 = vector.shape_cast %47 : vector<1x8x4x2xf32> to vector<8x4x2xf32>
    %49 = vector.shape_cast %46 : vector<8x4x2xf32> to vector<1x8x4x2xf32>
    tpu.vector_store %arg3[%c1, %c0_10, %c0_11, %c0_12], %49 {strides = array<i32>} : memref<3x8x4x2xf32, #tpu.memory_space<vmem>>, vector<1x8x4x2xf32>,
    %50 = vector.extract_strided_slice %0 {offsets = [4, 0, 0], sizes = [1, 8, 2], strides = [1, 1, 1]} : vector<9x8x2xf32> to vector<1x8x2xf32>
    %51 = vector.shape_cast %50 : vector<1x8x2xf32> to vector<8x2xf32>
    %52 = vector.shape_cast %51 : vector<8x2xf32> to vector<8x1x2xf32>
    %53 = vector.extract_strided_slice %1 {offsets = [4, 0, 0], sizes = [1, 4, 2], strides = [1, 1, 1]} : vector<9x4x2xf32> to vector<1x4x2xf32>
    %54 = vector.shape_cast %53 : vector<1x4x2xf32> to vector<4x2xf32>
    %55 = vector.shape_cast %54 : vector<4x2xf32> to vector<1x4x2xf32>
    %56 = vector.broadcast %52 : vector<8x1x2xf32> to vector<8x4x2xf32>
    %57 = vector.broadcast %55 : vector<1x4x2xf32> to vector<8x4x2xf32>
    %58 = arith.mulf %56, %57 : vector<8x4x2xf32>
    %59 = vector.extract_strided_slice %0 {offsets = [5, 0, 0], sizes = [1, 8, 2], strides = [1, 1, 1]} : vector<9x8x2xf32> to vector<1x8x2xf32>
    %60 = vector.shape_cast %59 : vector<1x8x2xf32> to vector<8x2xf32>
    %61 = vector.shape_cast %60 : vector<8x2xf32> to vector<8x1x2xf32>
    %62 = vector.extract_strided_slice %1 {offsets = [5, 0, 0], sizes = [1, 4, 2], strides = [1, 1, 1]} : vector<9x4x2xf32> to vector<1x4x2xf32>
    %63 = vector.shape_cast %62 : vector<1x4x2xf32> to vector<4x2xf32>
    %64 = vector.shape_cast %63 : vector<4x2xf32> to vector<1x4x2xf32>
    %65 = vector.broadcast %61 : vector<8x1x2xf32> to vector<8x4x2xf32>
    %66 = vector.broadcast %64 : vector<1x4x2xf32> to vector<8x4x2xf32>
    %67 = arith.mulf %65, %66 : vector<8x4x2xf32>
    %68 = arith.addf %58, %67 : vector<8x4x2xf32>
    %69 = vector.extract_strided_slice %0 {offsets = [6, 0, 0], sizes = [1, 8, 2], strides = [1, 1, 1]} : vector<9x8x2xf32> to vector<1x8x2xf32>
    %70 = vector.shape_cast %69 : vector<1x8x2xf32> to vector<8x2xf32>
    %71 = vector.shape_cast %70 : vector<8x2xf32> to vector<8x1x2xf32>
    %72 = vector.extract_strided_slice %1 {offsets = [6, 0, 0], sizes = [1, 4, 2], strides = [1, 1, 1]} : vector<9x4x2xf32> to vector<1x4x2xf32>
    %73 = vector.shape_cast %72 : vector<1x4x2xf32> to vector<4x2xf32>
    %74 = vector.shape_cast %73 : vector<4x2xf32> to vector<1x4x2xf32>
    %75 = vector.broadcast %71 : vector<8x1x2xf32> to vector<8x4x2xf32>
    %76 = vector.broadcast %74 : vector<1x4x2xf32> to vector<8x4x2xf32>
    %77 = arith.mulf %75, %76 : vector<8x4x2xf32>
    %78 = arith.addf %68, %77 : vector<8x4x2xf32>
    %79 = vector.extract_strided_slice %0 {offsets = [7, 0, 0], sizes = [1, 8, 2], strides = [1, 1, 1]} : vector<9x8x2xf32> to vector<1x8x2xf32>
    %80 = vector.shape_cast %79 : vector<1x8x2xf32> to vector<8x2xf32>
    %81 = vector.shape_cast %80 : vector<8x2xf32> to vector<8x1x2xf32>
    %82 = vector.extract_strided_slice %1 {offsets = [7, 0, 0], sizes = [1, 4, 2], strides = [1, 1, 1]} : vector<9x4x2xf32> to vector<1x4x2xf32>
    %83 = vector.shape_cast %82 : vector<1x4x2xf32> to vector<4x2xf32>
    %84 = vector.shape_cast %83 : vector<4x2xf32> to vector<1x4x2xf32>
    %85 = vector.broadcast %81 : vector<8x1x2xf32> to vector<8x4x2xf32>
    %86 = vector.broadcast %84 : vector<1x4x2xf32> to vector<8x4x2xf32>
    %87 = arith.mulf %85, %86 : vector<8x4x2xf32>
    %88 = arith.addf %78, %87 : vector<8x4x2xf32>
    %89 = vector.extract_strided_slice %0 {offsets = [8, 0, 0], sizes = [1, 8, 2], strides = [1, 1, 1]} : vector<9x8x2xf32> to vector<1x8x2xf32>
    %90 = vector.shape_cast %89 : vector<1x8x2xf32> to vector<8x2xf32>
    %91 = vector.shape_cast %90 : vector<8x2xf32> to vector<8x1x2xf32>
    %92 = vector.extract_strided_slice %1 {offsets = [8, 0, 0], sizes = [1, 4, 2], strides = [1, 1, 1]} : vector<9x4x2xf32> to vector<1x4x2xf32>
    %93 = vector.shape_cast %92 : vector<1x4x2xf32> to vector<4x2xf32>
    %94 = vector.shape_cast %93 : vector<4x2xf32> to vector<1x4x2xf32>
    %95 = vector.broadcast %91 : vector<8x1x2xf32> to vector<8x4x2xf32>
    %96 = vector.broadcast %94 : vector<1x4x2xf32> to vector<8x4x2xf32>
    %97 = arith.mulf %95, %96 : vector<8x4x2xf32>
    %98 = arith.addf %88, %97 : vector<8x4x2xf32>
    %cst_13 = arith.constant 0.44721359 : f32
    %99 = vector.broadcast %cst_13 : f32 to vector<8x4x2xf32>
    %100 = arith.mulf %98, %99 : vector<8x4x2xf32>
    %c2 = arith.constant 2 : index
    %c0_14 = arith.constant 0 : index
    %c0_15 = arith.constant 0 : index
    %c0_16 = arith.constant 0 : index
    %101 = vector.load %arg3[%c2, %c0_14, %c0_15, %c0_16] : memref<3x8x4x2xf32, #tpu.memory_space<vmem>>, vector<1x8x4x2xf32>
    %102 = vector.shape_cast %101 : vector<1x8x4x2xf32> to vector<8x4x2xf32>
    %103 = vector.shape_cast %100 : vector<8x4x2xf32> to vector<1x8x4x2xf32>
    tpu.vector_store %arg3[%c2, %c0_14, %c0_15, %c0_16], %103 {strides = array<i32>} : memref<3x8x4x2xf32, #tpu.memory_space<vmem>>, vector<1x8x4x2xf32>,
    return
  }
  func.func @transform_0(%arg0: i32) -> (i32, i32, i32) {
    %c0_i32 = arith.constant 0 : i32
    %c0_i32_0 = arith.constant 0 : i32
    %c0_i32_1 = arith.constant 0 : i32
    return %c0_i32, %c0_i32_0, %arg0 : i32, i32, i32
  }
  func.func @transform_1(%arg0: i32) -> (i32, i32, i32) {
    %c0_i32 = arith.constant 0 : i32
    %c0_i32_0 = arith.constant 0 : i32
    %c0_i32_1 = arith.constant 0 : i32
    return %c0_i32, %c0_i32_0, %arg0 : i32, i32, i32
  }
  func.func @transform_2(%arg0: i32) -> (i32, i32, i32, i32) {
    %c0_i32 = arith.constant 0 : i32
    %c0_i32_0 = arith.constant 0 : i32
    %c0_i32_1 = arith.constant 0 : i32
    %c0_i32_2 = arith.constant 0 : i32
    return %c0_i32, %c0_i32_0, %c0_i32_1, %arg0 : i32, i32, i32, i32
  }
}

</mosaic_0001>

<llo_original>
// kernel: tpu_custom_call.1
$region0: #{tpu_custom_call.1}
  #allocation0 [shape = 'u32[]', space=smem, size = 0x4, offset = 0x4, fixed_abs, tag = 'smem constant byte address 0x4 - core index']
  #allocation1 [shape = 'u32[144,128]{1,0:T(1,128)}', space=vmem, size = 0x12000, scoped, tag = 'internal scratch']
  %s0 = inlined_call_operand.vmem [shape: f32[9,8,2], index: 0, kind: input, shape index: {}]
  %s1 = inlined_call_operand.vmem [shape: f32[9,4,2], index: 1, kind: input, shape index: {}]
  %s2 = inlined_call_operand.vmem [shape: f32[3,8,4,2], index: 2, kind: output, shape index: {}]
  %s3 = sld [smem:[#allocation0]]
  $region18: #{tpu_custom_call.1} parent=0
    _
  %s5 = ssub.s32 1, %s3
  %s6 = scalar_select 0, %s5, %s3
  // Predicated region
  $region2: #{tpu_custom_call.1} parent=0 // pred_check
    _
  $region3: #{tpu_custom_call.1} parent=0 // pred_check_branch
    %8 = sbr.rel (0) target = $region5
  $region4: #{tpu_custom_call.1} parent=0 // pred_region
    _
  $region5: #{tpu_custom_call.1} parent=0 // pred_fallthru
    _
  // Predicated region
  $region6: #{tpu_custom_call.1} parent=0 // pred_check
    _
  $region7: #{tpu_custom_call.1} parent=0 // pred_check_branch
    %10 = sbr.rel (0) target = $region9
  $region8: #{tpu_custom_call.1} parent=0 // pred_region
    _
  $region9: #{tpu_custom_call.1} parent=0 // pred_fallthru
    _
  %v11 = vld [vmem:[%s0] sm:$0xff]
  %v12 = vld [vmem:[%s0 + $0x8] sm:$0xff]
  %v13 = vld [vmem:[%s0 + $0x10] sm:$0xff]
  %v14 = vld [vmem:[%s0 + $0x18] sm:$0xff]
  %v15 = vld [vmem:[%s0 + $0x20] sm:$0xff]
  %v16 = vld [vmem:[%s0 + $0x28] sm:$0xff]
  %v17 = vld [vmem:[%s0 + $0x30] sm:$0xff]
  %v18 = vld [vmem:[%s0 + $0x38] sm:$0xff]
  %v19 = vld [vmem:[%s0 + $0x40] sm:$0xff]
  %v20 = vld [vmem:[%s1] sm:$0xf]
  %v21 = vld [vmem:[%s1 + $0x4] sm:$0xf]
  %v22 = vld [vmem:[%s1 + $0x8] sm:$0xf]
  %v23 = vld [vmem:[%s1 + $0xc] sm:$0xf]
  %v24 = vld [vmem:[%s1 + $0x10] sm:$0xf]
  %v25 = vld [vmem:[%s1 + $0x14] sm:$0xf]
  %v26 = vld [vmem:[%s1 + $0x18] sm:$0xf]
  %v27 = vld [vmem:[%s1 + $0x1c] sm:$0xf]
  %v28 = vld [vmem:[%s1 + $0x20] sm:$0xf]
  %v30 = vcombine.high %v11, %v11
  %v32 = vunpack.c.l.s4 1966171168
  %v33 = vunpack.c.0.s8 %v32
  %v34 = vlaneseq
  %v35 = vshrl.u32 %v34, 7
  %v36 = vsub.s32 %v33, %v35
  %v37 = vrot.slane %v11, %v36
  %v39 = vunpack.c.l.s4 1966171168
  %v40 = vunpack.c.0.s8 %v39
  %v41 = vlaneseq
  %v42 = vshrl.u32 %v41, 7
  %v43 = vsub.s32 %v40, %v42
  %v44 = vrot.slane %v30, %v43
  %v45 = vcombine.high %v37, %v37
  %v46 = vcombine.high %v44, %v44
  %v48 = vunpack.c.l.s4 1966171168
  %v49 = vunpack.c.0.s8 %v48
  %v50 = vlaneseq
  %v51 = vshrl.u32 %v50, 7
  %v52 = vsub.s32 %v49, %v51
  %v53 = vrot.slane %v37, %v52
  %v55 = vunpack.c.l.s4 1966171168
  %v56 = vunpack.c.0.s8 %v55
  %v57 = vlaneseq
  %v58 = vshrl.u32 %v57, 7
  %v59 = vsub.s32 %v56, %v58
  %v60 = vrot.slane %v44, %v59
  %v62 = vunpack.c.l.s4 1966171168
  %v63 = vunpack.c.0.s8 %v62
  %v64 = vlaneseq
  %v65 = vshrl.u32 %v64, 7
  %v66 = vsub.s32 %v63, %v65
  %v67 = vrot.slane %v45, %v66
  %v69 = vunpack.c.l.s4 1966171168
  %v70 = vunpack.c.0.s8 %v69
  %v71 = vlaneseq
  %v72 = vshrl.u32 %v71, 7
  %v73 = vsub.s32 %v70, %v72
  %v74 = vrot.slane %v46, %v73
  %v75 = vcombine.high %v53, %v53
  %v76 = vcombine.high %v60, %v60
  %v77 = vcombine.high %v67, %v67
  %v78 = vcombine.high %v74, %v74
  %v79 = vlaneseq
  %v80 = vshrl.u32 %v79, 7
  %v81 = vsub.s32 0, %v80
  %v82 = vrot.slane %v53, %v81
  %v83 = vlaneseq
  %v84 = vshrl.u32 %v83, 7
  %v85 = vsub.s32 0, %v84
  %v86 = vrot.slane %v67, %v85
  %v87 = vlaneseq
  %v88 = vshrl.u32 %v87, 7
  %v89 = vsub.s32 0, %v88
  %v90 = vrot.slane %v75, %v89
  %v91 = vlaneseq
  %v92 = vshrl.u32 %v91, 7
  %v93 = vsub.s32 0, %v92
  %v94 = vrot.slane %v77, %v93
  %v95 = vlaneseq
  %v96 = vshrl.u32 %v95, 7
  %v97 = vsub.s32 0, %v96
  %v98 = vrot.slane %v60, %v97
  %v99 = vlaneseq
  %v100 = vshrl.u32 %v99, 7
  %v101 = vsub.s32 0, %v100
  %v102 = vrot.slane %v74, %v101
  %v103 = vlaneseq
  %v104 = vshrl.u32 %v103, 7
  %v105 = vsub.s32 0, %v104
  %v106 = vrot.slane %v76, %v105
  %v107 = vlaneseq
  %v108 = vshrl.u32 %v107, 7
  %v109 = vsub.s32 0, %v108
  %v110 = vrot.slane %v78, %v109
  %v119 = vmul.f32 %v82, %v20
  %v120 = vmul.f32 %v86, %v20
  %v121 = vmul.f32 %v90, %v20
  %v122 = vmul.f32 %v94, %v20
  %v123 = vmul.f32 %v98, %v20
  %v124 = vmul.f32 %v102, %v20
  %v125 = vmul.f32 %v106, %v20
  %v126 = vmul.f32 %v110, %v20
  %vm127 = vcmask 11264
  %128 = vst.msk [vmem:[%s2] sm:$0xf] %vm127, %v119
  %129 = vst.msk [vmem:[%s2 + $0x4] sm:$0xf] %vm127, %v120
  %130 = vst.msk [vmem:[%s2 + $0x8] sm:$0xf] %vm127, %v121
  %131 = vst.msk [vmem:[%s2 + $0xc] sm:$0xf] %vm127, %v122
  %132 = vst.msk [vmem:[%s2 + $0x10] sm:$0xf] %vm127, %v123
  %133 = vst.msk [vmem:[%s2 + $0x14] sm:$0xf] %vm127, %v124
  %134 = vst.msk [vmem:[%s2 + $0x18] sm:$0xf] %vm127, %v125
  %135 = vst.msk [vmem:[%s2 + $0x1c] sm:$0xf] %vm127, %v126
  %v137 = vcombine.high %v12, %v12
  %v139 = vunpack.c.l.s4 1966171168
  %v140 = vunpack.c.0.s8 %v139
  %v141 = vlaneseq
  %v142 = vshrl.u32 %v141, 7
  %v143 = vsub.s32 %v140, %v142
  %v144 = vrot.slane %v12, %v143
  %v146 = vunpack.c.l.s4 1966171168
  %v147 = vunpack.c.0.s8 %v146
  %v148 = vlaneseq
  %v149 = vshrl.u32 %v148, 7
  %v150 = vsub.s32 %v147, %v149
  %v151 = vrot.slane %v137, %v150
  %v152 = vcombine.high %v144, %v144
  %v153 = vcombine.high %v151, %v151
  %v155 = vunpack.c.l.s4 1966171168
  %v156 = vunpack.c.0.s8 %v155
  %v157 = vlaneseq
  %v158 = vshrl.u32 %v157, 7
  %v159 = vsub.s32 %v156, %v158
  %v160 = vrot.slane %v144, %v159
  %v162 = vunpack.c.l.s4 1966171168
  %v163 = vunpack.c.0.s8 %v162
  %v164 = vlaneseq
  %v165 = vshrl.u32 %v164, 7
  %v166 = vsub.s32 %v163, %v165
  %v167 = vrot.slane %v151, %v166
  %v169 = vunpack.c.l.s4 1966171168
  %v170 = vunpack.c.0.s8 %v169
  %v171 = vlaneseq
  %v172 = vshrl.u32 %v171, 7
  %v173 = vsub.s32 %v170, %v172
  %v174 = vrot.slane %v152, %v173
  %v176 = vunpack.c.l.s4 1966171168
  %v177 = vunpack.c.0.s8 %v176
  %v178 = vlaneseq
  %v179 = vshrl.u32 %v178, 7
  %v180 = vsub.s32 %v177, %v179
  %v181 = vrot.slane %v153, %v180
  %v182 = vcombine.high %v160, %v160
  %v183 = vcombine.high %v167, %v167
  %v184 = vcombine.high %v174, %v174
  %v185 = vcombine.high %v181, %v181
  %v186 = vlaneseq
  %v187 = vshrl.u32 %v186, 7
  %v188 = vsub.s32 0, %v187
  %v189 = vrot.slane %v160, %v188
  %v190 = vlaneseq
  %v191 = vshrl.u32 %v190, 7
  %v192 = vsub.s32 0, %v191
  %v193 = vrot.slane %v174, %v192
  %v194 = vlaneseq
  %v195 = vshrl.u32 %v194, 7
  %v196 = vsub.s32 0, %v195
  %v197 = vrot.slane %v182, %v196
  %v198 = vlaneseq
  %v199 = vshrl.u32 %v198, 7
  %v200 = vsub.s32 0, %v199
  %v201 = vrot.slane %v184, %v200
  %v202 = vlaneseq
  %v203 = vshrl.u32 %v202, 7
  %v204 = vsub.s32 0, %v203
  %v205 = vrot.slane %v167, %v204
  %v206 = vlaneseq
  %v207 = vshrl.u32 %v206, 7
  %v208 = vsub.s32 0, %v207
  %v209 = vrot.slane %v181, %v208
  %v210 = vlaneseq
  %v211 = vshrl.u32 %v210, 7
  %v212 = vsub.s32 0, %v211
  %v213 = vrot.slane %v183, %v212
  %v214 = vlaneseq
  %v215 = vshrl.u32 %v214, 7
  %v216 = vsub.s32 0, %v215
  %v217 = vrot.slane %v185, %v216
  %v226 = vmul.f32 %v189, %v21
  %v227 = vmul.f32 %v193, %v21
  %v228 = vmul.f32 %v197, %v21
  %v229 = vmul.f32 %v201, %v21
  %v230 = vmul.f32 %v205, %v21
  %v231 = vmul.f32 %v209, %v21
  %v232 = vmul.f32 %v213, %v21
  %v233 = vmul.f32 %v217, %v21
  %v235 = vcombine.high %v13, %v13
  %v237 = vunpack.c.l.s4 1966171168
  %v238 = vunpack.c.0.s8 %v237
  %v239 = vlaneseq
  %v240 = vshrl.u32 %v239, 7
  %v241 = vsub.s32 %v238, %v240
  %v242 = vrot.slane %v13, %v241
  %v244 = vunpack.c.l.s4 1966171168
  %v245 = vunpack.c.0.s8 %v244
  %v246 = vlaneseq
  %v247 = vshrl.u32 %v246, 7
  %v248 = vsub.s32 %v245, %v247
  %v249 = vrot.slane %v235, %v248
  %v250 = vcombine.high %v242, %v242
  %v251 = vcombine.high %v249, %v249
  %v253 = vunpack.c.l.s4 1966171168
  %v254 = vunpack.c.0.s8 %v253
  %v255 = vlaneseq
  %v256 = vshrl.u32 %v255, 7
  %v257 = vsub.s32 %v254, %v256
  %v258 = vrot.slane %v242, %v257
  %v260 = vunpack.c.l.s4 1966171168
  %v261 = vunpack.c.0.s8 %v260
  %v262 = vlaneseq
  %v263 = vshrl.u32 %v262, 7
  %v264 = vsub.s32 %v261, %v263
  %v265 = vrot.slane %v249, %v264
  %v267 = vunpack.c.l.s4 1966171168
  %v268 = vunpack.c.0.s8 %v267
  %v269 = vlaneseq
  %v270 = vshrl.u32 %v269, 7
  %v271 = vsub.s32 %v268, %v270
  %v272 = vrot.slane %v250, %v271
  %v274 = vunpack.c.l.s4 1966171168
  %v275 = vunpack.c.0.s8 %v274
  %v276 = vlaneseq
  %v277 = vshrl.u32 %v276, 7
  %v278 = vsub.s32 %v275, %v277
  %v279 = vrot.slane %v251, %v278
  %v280 = vcombine.high %v258, %v258
  %v281 = vcombine.high %v265, %v265
  %v282 = vcombine.high %v272, %v272
  %v283 = vcombine.high %v279, %v279
  %v284 = vlaneseq
  %v285 = vshrl.u32 %v284, 7
  %v286 = vsub.s32 0, %v285
  %v287 = vrot.slane %v258, %v286
  %v288 = vlaneseq
  %v289 = vshrl.u32 %v288, 7
  %v290 = vsub.s32 0, %v289
  %v291 = vrot.slane %v272, %v290
  %v292 = vlaneseq
  %v293 = vshrl.u32 %v292, 7
  %v294 = vsub.s32 0, %v293
  %v295 = vrot.slane %v280, %v294
  %v296 = vlaneseq
  %v297 = vshrl.u32 %v296, 7
  %v298 = vsub.s32 0, %v297
  %v299 = vrot.slane %v282, %v298
  %v300 = vlaneseq
  %v301 = vshrl.u32 %v300, 7
  %v302 = vsub.s32 0, %v301
  %v303 = vrot.slane %v265, %v302
  %v304 = vlaneseq
  %v305 = vshrl.u32 %v304, 7
  %v306 = vsub.s32 0, %v305
  %v307 = vrot.slane %v279, %v306
  %v308 = vlaneseq
  %v309 = vshrl.u32 %v308, 7
  %v310 = vsub.s32 0, %v309
  %v311 = vrot.slane %v281, %v310
  %v312 = vlaneseq
  %v313 = vshrl.u32 %v312, 7
  %v314 = vsub.s32 0, %v313
  %v315 = vrot.slane %v283, %v314
  %v324 = vmul.f32 %v287, %v22
  %v325 = vmul.f32 %v291, %v22
  %v326 = vmul.f32 %v295, %v22
  %v327 = vmul.f32 %v299, %v22
  %v328 = vmul.f32 %v303, %v22
  %v329 = vmul.f32 %v307, %v22
  %v330 = vmul.f32 %v311, %v22
  %v331 = vmul.f32 %v315, %v22
  %v332 = vadd.f32 %v226, %v324
  %v333 = vadd.f32 %v227, %v325
  %v334 = vadd.f32 %v228, %v326
  %v335 = vadd.f32 %v229, %v327
  %v336 = vadd.f32 %v230, %v328
  %v337 = vadd.f32 %v231, %v329
  %v338 = vadd.f32 %v232, %v330
  %v339 = vadd.f32 %v233, %v331
  %v341 = vcombine.high %v14, %v14
  %v343 = vunpack.c.l.s4 1966171168
  %v344 = vunpack.c.0.s8 %v343
  %v345 = vlaneseq
  %v346 = vshrl.u32 %v345, 7
  %v347 = vsub.s32 %v344, %v346
  %v348 = vrot.slane %v14, %v347
  %v350 = vunpack.c.l.s4 1966171168
  %v351 = vunpack.c.0.s8 %v350
  %v352 = vlaneseq
  %v353 = vshrl.u32 %v352, 7
  %v354 = vsub.s32 %v351, %v353
  %v355 = vrot.slane %v341, %v354
  %v356 = vcombine.high %v348, %v348
  %v357 = vcombine.high %v355, %v355
  %v359 = vunpack.c.l.s4 1966171168
  %v360 = vunpack.c.0.s8 %v359
  %v361 = vlaneseq
  %v362 = vshrl.u32 %v361, 7
  %v363 = vsub.s32 %v360, %v362
  %v364 = vrot.slane %v348, %v363
  %v366 = vunpack.c.l.s4 1966171168
  %v367 = vunpack.c.0.s8 %v366
  %v368 = vlaneseq
  %v369 = vshrl.u32 %v368, 7
  %v370 = vsub.s32 %v367, %v369
  %v371 = vrot.slane %v355, %v370
  %v373 = vunpack.c.l.s4 1966171168
  %v374 = vunpack.c.0.s8 %v373
  %v375 = vlaneseq
  %v376 = vshrl.u32 %v375, 7
  %v377 = vsub.s32 %v374, %v376
  %v378 = vrot.slane %v356, %v377
  %v380 = vunpack.c.l.s4 1966171168
  %v381 = vunpack.c.0.s8 %v380
  %v382 = vlaneseq
  %v383 = vshrl.u32 %v382, 7
  %v384 = vsub.s32 %v381, %v383
  %v385 = vrot.slane %v357, %v384
  %v386 = vcombine.high %v364, %v364
  %v387 = vcombine.high %v371, %v371
  %v388 = vcombine.high %v378, %v378
  %v389 = vcombine.high %v385, %v385
  %v390 = vlaneseq
  %v391 = vshrl.u32 %v390, 7
  %v392 = vsub.s32 0, %v391
  %v393 = vrot.slane %v364, %v392
  %v394 = vlaneseq
  %v395 = vshrl.u32 %v394, 7
  %v396 = vsub.s32 0, %v395
  %v397 = vrot.slane %v378, %v396
  %v398 = vlaneseq
  %v399 = vshrl.u32 %v398, 7
  %v400 = vsub.s32 0, %v399
  %v401 = vrot.slane %v386, %v400
  %v402 = vlaneseq
  %v403 = vshrl.u32 %v402, 7
  %v404 = vsub.s32 0, %v403
  %v405 = vrot.slane %v388, %v404
  %v406 = vlaneseq
  %v407 = vshrl.u32 %v406, 7
  %v408 = vsub.s32 0, %v407
  %v409 = vrot.slane %v371, %v408
  %v410 = vlaneseq
  %v411 = vshrl.u32 %v410, 7
  %v412 = vsub.s32 0, %v411
  %v413 = vrot.slane %v385, %v412
  %v414 = vlaneseq
  %v415 = vshrl.u32 %v414, 7
  %v416 = vsub.s32 0, %v415
  %v417 = vrot.slane %v387, %v416
  %v418 = vlaneseq
  %v419 = vshrl.u32 %v418, 7
  %v420 = vsub.s32 0, %v419
  %v421 = vrot.slane %v389, %v420
  %v430 = vmul.f32 %v393, %v23
  %v431 = vmul.f32 %v397, %v23
  %v432 = vmul.f32 %v401, %v23
  %v433 = vmul.f32 %v405, %v23
  %v434 = vmul.f32 %v409, %v23
  %v435 = vmul.f32 %v413, %v23
  %v436 = vmul.f32 %v417, %v23
  %v437 = vmul.f32 %v421, %v23
  %v438 = vadd.f32 %v332, %v430
  %v439 = vadd.f32 %v333, %v431
  %v440 = vadd.f32 %v334, %v432
  %v441 = vadd.f32 %v335, %v433
  %v442 = vadd.f32 %v336, %v434
  %v443 = vadd.f32 %v337, %v435
  %v444 = vadd.f32 %v338, %v436
  %v445 = vadd.f32 %v339, %v437
  %v446 = vmul.f32 %v438, 0.57735026
  %v447 = vmul.f32 %v439, 0.57735026
  %v448 = vmul.f32 %v440, 0.57735026
  %v449 = vmul.f32 %v441, 0.57735026
  %v450 = vmul.f32 %v442, 0.57735026
  %v451 = vmul.f32 %v443, 0.57735026
  %v452 = vmul.f32 %v444, 0.57735026
  %v453 = vmul.f32 %v445, 0.57735026
  %s454 = scalar_lea.vmem %s2, 32
  %455 = vst.msk [vmem:[%s454] sm:$0xf] %vm127, %v446
  %456 = vst.msk [vmem:[%s454 + $0x4] sm:$0xf] %vm127, %v447
  %457 = vst.msk [vmem:[%s454 + $0x8] sm:$0xf] %vm127, %v448
  %458 = vst.msk [vmem:[%s454 + $0xc] sm:$0xf] %vm127, %v449
  %459 = vst.msk [vmem:[%s454 + $0x10] sm:$0xf] %vm127, %v450
  %460 = vst.msk [vmem:[%s454 + $0x14] sm:$0xf] %vm127, %v451
  %461 = vst.msk [vmem:[%s454 + $0x18] sm:$0xf] %vm127, %v452
  %462 = vst.msk [vmem:[%s454 + $0x1c] sm:$0xf] %vm127, %v453
  %v464 = vcombine.high %v15, %v15
  %v466 = vunpack.c.l.s4 1966171168
  %v467 = vunpack.c.0.s8 %v466
  %v468 = vlaneseq
  %v469 = vshrl.u32 %v468, 7
  %v470 = vsub.s32 %v467, %v469
  %v471 = vrot.slane %v15, %v470
  %v473 = vunpack.c.l.s4 1966171168
  %v474 = vunpack.c.0.s8 %v473
  %v475 = vlaneseq
  %v476 = vshrl.u32 %v475, 7
  %v477 = vsub.s32 %v474, %v476
  %v478 = vrot.slane %v464, %v477
  %v479 = vcombine.high %v471, %v471
  %v480 = vcombine.high %v478, %v478
  %v482 = vunpack.c.l.s4 1966171168
  %v483 = vunpack.c.0.s8 %v482
  %v484 = vlaneseq
  %v485 = vshrl.u32 %v484, 7
  %v486 = vsub.s32 %v483, %v485
  %v487 = vrot.slane %v471, %v486
  %v489 = vunpack.c.l.s4 1966171168
  %v490 = vunpack.c.0.s8 %v489
  %v491 = vlaneseq
  %v492 = vshrl.u32 %v491, 7
  %v493 = vsub.s32 %v490, %v492
  %v494 = vrot.slane %v478, %v493
  %v496 = vunpack.c.l.s4 1966171168
  %v497 = vunpack.c.0.s8 %v496
  %v498 = vlaneseq
  %v499 = vshrl.u32 %v498, 7
  %v500 = vsub.s32 %v497, %v499
  %v501 = vrot.slane %v479, %v500
  %v503 = vunpack.c.l.s4 1966171168
  %v504 = vunpack.c.0.s8 %v503
  %v505 = vlaneseq
  %v506 = vshrl.u32 %v505, 7
  %v507 = vsub.s32 %v504, %v506
  %v508 = vrot.slane %v480, %v507
  %v509 = vcombine.high %v487, %v487
  %v510 = vcombine.high %v494, %v494
  %v511 = vcombine.high %v501, %v501
  %v512 = vcombine.high %v508, %v508
  %v513 = vlaneseq
  %v514 = vshrl.u32 %v513, 7
  %v515 = vsub.s32 0, %v514
  %v516 = vrot.slane %v487, %v515
  %v517 = vlaneseq
  %v518 = vshrl.u32 %v517, 7
  %v519 = vsub.s32 0, %v518
  %v520 = vrot.slane %v501, %v519
  %v521 = vlaneseq
  %v522 = vshrl.u32 %v521, 7
  %v523 = vsub.s32 0, %v522
  %v524 = vrot.slane %v509, %v523
  %v525 = vlaneseq
  %v526 = vshrl.u32 %v525, 7
  %v527 = vsub.s32 0, %v526
  %v528 = vrot.slane %v511, %v527
  %v529 = vlaneseq
  %v530 = vshrl.u32 %v529, 7
  %v531 = vsub.s32 0, %v530
  %v532 = vrot.slane %v494, %v531
  %v533 = vlaneseq
  %v534 = vshrl.u32 %v533, 7
  %v535 = vsub.s32 0, %v534
  %v536 = vrot.slane %v508, %v535
  %v537 = vlaneseq
  %v538 = vshrl.u32 %v537, 7
  %v539 = vsub.s32 0, %v538
  %v540 = vrot.slane %v510, %v539
  %v541 = vlaneseq
  %v542 = vshrl.u32 %v541, 7
  %v543 = vsub.s32 0, %v542
  %v544 = vrot.slane %v512, %v543
  %v553 = vmul.f32 %v516, %v24
  %v554 = vmul.f32 %v520, %v24
  %v555 = vmul.f32 %v524, %v24
  %v556 = vmul.f32 %v528, %v24
  %v557 = vmul.f32 %v532, %v24
  %v558 = vmul.f32 %v536, %v24
  %v559 = vmul.f32 %v540, %v24
  %v560 = vmul.f32 %v544, %v24
  %v562 = vcombine.high %v16, %v16
  %v564 = vunpack.c.l.s4 1966171168
  %v565 = vunpack.c.0.s8 %v564
  %v566 = vlaneseq
  %v567 = vshrl.u32 %v566, 7
  %v568 = vsub.s32 %v565, %v567
  %v569 = vrot.slane %v16, %v568
  %v571 = vunpack.c.l.s4 1966171168
  %v572 = vunpack.c.0.s8 %v571
  %v573 = vlaneseq
  %v574 = vshrl.u32 %v573, 7
  %v575 = vsub.s32 %v572, %v574
  %v576 = vrot.slane %v562, %v575
  %v577 = vcombine.high %v569, %v569
  %v578 = vcombine.high %v576, %v576
  %v580 = vunpack.c.l.s4 1966171168
  %v581 = vunpack.c.0.s8 %v580
  %v582 = vlaneseq
  %v583 = vshrl.u32 %v582, 7
  %v584 = vsub.s32 %v581, %v583
  %v585 = vrot.slane %v569, %v584
  %v587 = vunpack.c.l.s4 1966171168
  %v588 = vunpack.c.0.s8 %v587
  %v589 = vlaneseq
  %v590 = vshrl.u32 %v589, 7
  %v591 = vsub.s32 %v588, %v590
  %v592 = vrot.slane %v576, %v591
  %v594 = vunpack.c.l.s4 1966171168
  %v595 = vunpack.c.0.s8 %v594
  %v596 = vlaneseq
  %v597 = vshrl.u32 %v596, 7
  %v598 = vsub.s32 %v595, %v597
  %v599 = vrot.slane %v577, %v598
  %v601 = vunpack.c.l.s4 1966171168
  %v602 = vunpack.c.0.s8 %v601
  %v603 = vlaneseq
  %v604 = vshrl.u32 %v603, 7
  %v605 = vsub.s32 %v602, %v604
  %v606 = vrot.slane %v578, %v605
  %v607 = vcombine.high %v585, %v585
  %v608 = vcombine.high %v592, %v592
  %v609 = vcombine.high %v599, %v599
  %v610 = vcombine.high %v606, %v606
  %v611 = vlaneseq
  %v612 = vshrl.u32 %v611, 7
  %v613 = vsub.s32 0, %v612
  %v614 = vrot.slane %v585, %v613
  %v615 = vlaneseq
  %v616 = vshrl.u32 %v615, 7
  %v617 = vsub.s32 0, %v616
  %v618 = vrot.slane %v599, %v617
  %v619 = vlaneseq
  %v620 = vshrl.u32 %v619, 7
  %v621 = vsub.s32 0, %v620
  %v622 = vrot.slane %v607, %v621
  %v623 = vlaneseq
  %v624 = vshrl.u32 %v623, 7
  %v625 = vsub.s32 0, %v624
  %v626 = vrot.slane %v609, %v625
  %v627 = vlaneseq
  %v628 = vshrl.u32 %v627, 7
  %v629 = vsub.s32 0, %v628
  %v630 = vrot.slane %v592, %v629
  %v631 = vlaneseq
  %v632 = vshrl.u32 %v631, 7
  %v633 = vsub.s32 0, %v632
  %v634 = vrot.slane %v606, %v633
  %v635 = vlaneseq
  %v636 = vshrl.u32 %v635, 7
  %v637 = vsub.s32 0, %v636
  %v638 = vrot.slane %v608, %v637
  %v639 = vlaneseq
  %v640 = vshrl.u32 %v639, 7
  %v641 = vsub.s32 0, %v640
  %v642 = vrot.slane %v610, %v641
  %v651 = vmul.f32 %v614, %v25
  %v652 = vmul.f32 %v618, %v25
  %v653 = vmul.f32 %v622, %v25
  %v654 = vmul.f32 %v626, %v25
  %v655 = vmul.f32 %v630, %v25
  %v656 = vmul.f32 %v634, %v25
  %v657 = vmul.f32 %v638, %v25
  %v658 = vmul.f32 %v642, %v25
  %v659 = vadd.f32 %v553, %v651
  %v660 = vadd.f32 %v554, %v652
  %v661 = vadd.f32 %v555, %v653
  %v662 = vadd.f32 %v556, %v654
  %v663 = vadd.f32 %v557, %v655
  %v664 = vadd.f32 %v558, %v656
  %v665 = vadd.f32 %v559, %v657
  %v666 = vadd.f32 %v560, %v658
  %v668 = vcombine.high %v17, %v17
  %v670 = vunpack.c.l.s4 1966171168
  %v671 = vunpack.c.0.s8 %v670
  %v672 = vlaneseq
  %v673 = vshrl.u32 %v672, 7
  %v674 = vsub.s32 %v671, %v673
  %v675 = vrot.slane %v17, %v674
  %v677 = vunpack.c.l.s4 1966171168
  %v678 = vunpack.c.0.s8 %v677
  %v679 = vlaneseq
  %v680 = vshrl.u32 %v679, 7
  %v681 = vsub.s32 %v678, %v680
  %v682 = vrot.slane %v668, %v681
  %v683 = vcombine.high %v675, %v675
  %v684 = vcombine.high %v682, %v682
  %v686 = vunpack.c.l.s4 1966171168
  %v687 = vunpack.c.0.s8 %v686
  %v688 = vlaneseq
  %v689 = vshrl.u32 %v688, 7
  %v690 = vsub.s32 %v687, %v689
  %v691 = vrot.slane %v675, %v690
  %v693 = vunpack.c.l.s4 1966171168
  %v694 = vunpack.c.0.s8 %v693
  %v695 = vlaneseq
  %v696 = vshrl.u32 %v695, 7
  %v697 = vsub.s32 %v694, %v696
  %v698 = vrot.slane %v682, %v697
  %v700 = vunpack.c.l.s4 1966171168
  %v701 = vunpack.c.0.s8 %v700
  %v702 = vlaneseq
  %v703 = vshrl.u32 %v702, 7
  %v704 = vsub.s32 %v701, %v703
  %v705 = vrot.slane %v683, %v704
  %v707 = vunpack.c.l.s4 1966171168
  %v708 = vunpack.c.0.s8 %v707
  %v709 = vlaneseq
  %v710 = vshrl.u32 %v709, 7
  %v711 = vsub.s32 %v708, %v710
  %v712 = vrot.slane %v684, %v711
  %v713 = vcombine.high %v691, %v691
  %v714 = vcombine.high %v698, %v698
  %v715 = vcombine.high %v705, %v705
  %v716 = vcombine.high %v712, %v712
  %v717 = vlaneseq
  %v718 = vshrl.u32 %v717, 7
  %v719 = vsub.s32 0, %v718
  %v720 = vrot.slane %v691, %v719
  %v721 = vlaneseq
  %v722 = vshrl.u32 %v721, 7
  %v723 = vsub.s32 0, %v722
  %v724 = vrot.slane %v705, %v723
  %v725 = vlaneseq
  %v726 = vshrl.u32 %v725, 7
  %v727 = vsub.s32 0, %v726
  %v728 = vrot.slane %v713, %v727
  %v729 = vlaneseq
  %v730 = vshrl.u32 %v729, 7
  %v731 = vsub.s32 0, %v730
  %v732 = vrot.slane %v715, %v731
  %v733 = vlaneseq
  %v734 = vshrl.u32 %v733, 7
  %v735 = vsub.s32 0, %v734
  %v736 = vrot.slane %v698, %v735
  %v737 = vlaneseq
  %v738 = vshrl.u32 %v737, 7
  %v739 = vsub.s32 0, %v738
  %v740 = vrot.slane %v712, %v739
  %v741 = vlaneseq
  %v742 = vshrl.u32 %v741, 7
  %v743 = vsub.s32 0, %v742
  %v744 = vrot.slane %v714, %v743
  %v745 = vlaneseq
  %v746 = vshrl.u32 %v745, 7
  %v747 = vsub.s32 0, %v746
  %v748 = vrot.slane %v716, %v747
  %v757 = vmul.f32 %v720, %v26
  %v758 = vmul.f32 %v724, %v26
  %v759 = vmul.f32 %v728, %v26
  %v760 = vmul.f32 %v732, %v26
  %v761 = vmul.f32 %v736, %v26
  %v762 = vmul.f32 %v740, %v26
  %v763 = vmul.f32 %v744, %v26
  %v764 = vmul.f32 %v748, %v26
  %v765 = vadd.f32 %v659, %v757
  %v766 = vadd.f32 %v660, %v758
  %v767 = vadd.f32 %v661, %v759
  %v768 = vadd.f32 %v662, %v760
  %v769 = vadd.f32 %v663, %v761
  %v770 = vadd.f32 %v664, %v762
  %v771 = vadd.f32 %v665, %v763
  %v772 = vadd.f32 %v666, %v764
  %v774 = vcombine.high %v18, %v18
  %v776 = vunpack.c.l.s4 1966171168
  %v777 = vunpack.c.0.s8 %v776
  %v778 = vlaneseq
  %v779 = vshrl.u32 %v778, 7
  %v780 = vsub.s32 %v777, %v779
  %v781 = vrot.slane %v18, %v780
  %v783 = vunpack.c.l.s4 1966171168
  %v784 = vunpack.c.0.s8 %v783
  %v785 = vlaneseq
  %v786 = vshrl.u32 %v785, 7
  %v787 = vsub.s32 %v784, %v786
  %v788 = vrot.slane %v774, %v787
  %v789 = vcombine.high %v781, %v781
  %v790 = vcombine.high %v788, %v788
  %v792 = vunpack.c.l.s4 1966171168
  %v793 = vunpack.c.0.s8 %v792
  %v794 = vlaneseq
  %v795 = vshrl.u32 %v794, 7
  %v796 = vsub.s32 %v793, %v795
  %v797 = vrot.slane %v781, %v796
  %v799 = vunpack.c.l.s4 1966171168
  %v800 = vunpack.c.0.s8 %v799
  %v801 = vlaneseq
  %v802 = vshrl.u32 %v801, 7
  %v803 = vsub.s32 %v800, %v802
  %v804 = vrot.slane %v788, %v803
  %v806 = vunpack.c.l.s4 1966171168
  %v807 = vunpack.c.0.s8 %v806
  %v808 = vlaneseq
  %v809 = vshrl.u32 %v808, 7
  %v810 = vsub.s32 %v807, %v809
  %v811 = vrot.slane %v789, %v810
  %v813 = vunpack.c.l.s4 1966171168
  %v814 = vunpack.c.0.s8 %v813
  %v815 = vlaneseq
  %v816 = vshrl.u32 %v815, 7
  %v817 = vsub.s32 %v814, %v816
  %v818 = vrot.slane %v790, %v817
  %v819 = vcombine.high %v797, %v797
  %v820 = vcombine.high %v804, %v804
  %v821 = vcombine.high %v811, %v811
  %v822 = vcombine.high %v818, %v818
  %v823 = vlaneseq
  %v824 = vshrl.u32 %v823, 7
  %v825 = vsub.s32 0, %v824
  %v826 = vrot.slane %v797, %v825
  %v827 = vlaneseq
  %v828 = vshrl.u32 %v827, 7
  %v829 = vsub.s32 0, %v828
  %v830 = vrot.slane %v811, %v829
  %v831 = vlaneseq
  %v832 = vshrl.u32 %v831, 7
  %v833 = vsub.s32 0, %v832
  %v834 = vrot.slane %v819, %v833
  %v835 = vlaneseq
  %v836 = vshrl.u32 %v835, 7
  %v837 = vsub.s32 0, %v836
  %v838 = vrot.slane %v821, %v837
  %v839 = vlaneseq
  %v840 = vshrl.u32 %v839, 7
  %v841 = vsub.s32 0, %v840
  %v842 = vrot.slane %v804, %v841
  %v843 = vlaneseq
  %v844 = vshrl.u32 %v843, 7
  %v845 = vsub.s32 0, %v844
  %v846 = vrot.slane %v818, %v845
  %v847 = vlaneseq
  %v848 = vshrl.u32 %v847, 7
  %v849 = vsub.s32 0, %v848
  %v850 = vrot.slane %v820, %v849
  %v851 = vlaneseq
  %v852 = vshrl.u32 %v851, 7
  %v853 = vsub.s32 0, %v852
  %v854 = vrot.slane %v822, %v853
  %v863 = vmul.f32 %v826, %v27
  %v864 = vmul.f32 %v830, %v27
  %v865 = vmul.f32 %v834, %v27
  %v866 = vmul.f32 %v838, %v27
  %v867 = vmul.f32 %v842, %v27
  %v868 = vmul.f32 %v846, %v27
  %v869 = vmul.f32 %v850, %v27
  %v870 = vmul.f32 %v854, %v27
  %v871 = vadd.f32 %v765, %v863
  %v872 = vadd.f32 %v766, %v864
  %v873 = vadd.f32 %v767, %v865
  %v874 = vadd.f32 %v768, %v866
  %v875 = vadd.f32 %v769, %v867
  %v876 = vadd.f32 %v770, %v868
  %v877 = vadd.f32 %v771, %v869
  %v878 = vadd.f32 %v772, %v870
  %v880 = vcombine.high %v19, %v19
  %v882 = vunpack.c.l.s4 1966171168
  %v883 = vunpack.c.0.s8 %v882
  %v884 = vlaneseq
  %v885 = vshrl.u32 %v884, 7
  %v886 = vsub.s32 %v883, %v885
  %v887 = vrot.slane %v19, %v886
  %v889 = vunpack.c.l.s4 1966171168
  %v890 = vunpack.c.0.s8 %v889
  %v891 = vlaneseq
  %v892 = vshrl.u32 %v891, 7
  %v893 = vsub.s32 %v890, %v892
  %v894 = vrot.slane %v880, %v893
  %v895 = vcombine.high %v887, %v887
  %v896 = vcombine.high %v894, %v894
  %v898 = vunpack.c.l.s4 1966171168
  %v899 = vunpack.c.0.s8 %v898
  %v900 = vlaneseq
  %v901 = vshrl.u32 %v900, 7
  %v902 = vsub.s32 %v899, %v901
  %v903 = vrot.slane %v887, %v902
  %v905 = vunpack.c.l.s4 1966171168
  %v906 = vunpack.c.0.s8 %v905
  %v907 = vlaneseq
  %v908 = vshrl.u32 %v907, 7
  %v909 = vsub.s32 %v906, %v908
  %v910 = vrot.slane %v894, %v909
  %v912 = vunpack.c.l.s4 1966171168
  %v913 = vunpack.c.0.s8 %v912
  %v914 = vlaneseq
  %v915 = vshrl.u32 %v914, 7
  %v916 = vsub.s32 %v913, %v915
  %v917 = vrot.slane %v895, %v916
  %v919 = vunpack.c.l.s4 1966171168
  %v920 = vunpack.c.0.s8 %v919
  %v921 = vlaneseq
  %v922 = vshrl.u32 %v921, 7
  %v923 = vsub.s32 %v920, %v922
  %v924 = vrot.slane %v896, %v923
  %v925 = vcombine.high %v903, %v903
  %v926 = vcombine.high %v910, %v910
  %v927 = vcombine.high %v917, %v917
  %v928 = vcombine.high %v924, %v924
  %v929 = vlaneseq
  %v930 = vshrl.u32 %v929, 7
  %v931 = vsub.s32 0, %v930
  %v932 = vrot.slane %v903, %v931
  %v933 = vlaneseq
  %v934 = vshrl.u32 %v933, 7
  %v935 = vsub.s32 0, %v934
  %v936 = vrot.slane %v917, %v935
  %v937 = vlaneseq
  %v938 = vshrl.u32 %v937, 7
  %v939 = vsub.s32 0, %v938
  %v940 = vrot.slane %v925, %v939
  %v941 = vlaneseq
  %v942 = vshrl.u32 %v941, 7
  %v943 = vsub.s32 0, %v942
  %v944 = vrot.slane %v927, %v943
  %v945 = vlaneseq
  %v946 = vshrl.u32 %v945, 7
  %v947 = vsub.s32 0, %v946
  %v948 = vrot.slane %v910, %v947
  %v949 = vlaneseq
  %v950 = vshrl.u32 %v949, 7
  %v951 = vsub.s32 0, %v950
  %v952 = vrot.slane %v924, %v951
  %v953 = vlaneseq
  %v954 = vshrl.u32 %v953, 7
  %v955 = vsub.s32 0, %v954
  %v956 = vrot.slane %v926, %v955
  %v957 = vlaneseq
  %v958 = vshrl.u32 %v957, 7
  %v959 = vsub.s32 0, %v958
  %v960 = vrot.slane %v928, %v959
  %v969 = vmul.f32 %v932, %v28
  %v970 = vmul.f32 %v936, %v28
  %v971 = vmul.f32 %v940, %v28
  %v972 = vmul.f32 %v944, %v28
  %v973 = vmul.f32 %v948, %v28
  %v974 = vmul.f32 %v952, %v28
  %v975 = vmul.f32 %v956, %v28
  %v976 = vmul.f32 %v960, %v28
  %v977 = vadd.f32 %v871, %v969
  %v978 = vadd.f32 %v872, %v970
  %v979 = vadd.f32 %v873, %v971
  %v980 = vadd.f32 %v874, %v972
  %v981 = vadd.f32 %v875, %v973
  %v982 = vadd.f32 %v876, %v974
  %v983 = vadd.f32 %v877, %v975
  %v984 = vadd.f32 %v878, %v976
  %v985 = vmul.f32 %v977, 0.4472136
  %v986 = vmul.f32 %v978, 0.4472136
  %v987 = vmul.f32 %v979, 0.4472136
  %v988 = vmul.f32 %v980, 0.4472136
  %v989 = vmul.f32 %v981, 0.4472136
  %v990 = vmul.f32 %v982, 0.4472136
  %v991 = vmul.f32 %v983, 0.4472136
  %v992 = vmul.f32 %v984, 0.4472136
  %s993 = scalar_lea.vmem %s2, 64
  %994 = vst.msk [vmem:[%s993] sm:$0xf] %vm127, %v985
  %995 = vst.msk [vmem:[%s993 + $0x4] sm:$0xf] %vm127, %v986
  %996 = vst.msk [vmem:[%s993 + $0x8] sm:$0xf] %vm127, %v987
  %997 = vst.msk [vmem:[%s993 + $0xc] sm:$0xf] %vm127, %v988
  %998 = vst.msk [vmem:[%s993 + $0x10] sm:$0xf] %vm127, %v989
  %999 = vst.msk [vmem:[%s993 + $0x14] sm:$0xf] %vm127, %v990
  %1000 = vst.msk [vmem:[%s993 + $0x18] sm:$0xf] %vm127, %v991
  %1001 = vst.msk [vmem:[%s993 + $0x1c] sm:$0xf] %vm127, %v992
  // Predicated region
  $region10: #{tpu_custom_call.1} parent=0 // pred_check
    _
  $region11: #{tpu_custom_call.1} parent=0 // pred_check_branch
    %1003 = sbr.rel (0) target = $region13
  $region12: #{tpu_custom_call.1} parent=0 // pred_region
    _
  $region13: #{tpu_custom_call.1} parent=0 // pred_fallthru
    _
  // Predicated region
  $region14: #{tpu_custom_call.1} parent=0 // pred_check
    _
  $region15: #{tpu_custom_call.1} parent=0 // pred_check_branch
    %1005 = sbr.rel (0) target = $region17
  $region16: #{tpu_custom_call.1} parent=0 // pred_region
    _
  $region17: #{tpu_custom_call.1} parent=0 // pred_fallthru
    _

</llo_original>
